<compile_context>
chip_gen: v6e
topology: v6e:2x2x1
jax: 0.10.0
libtpu: 0.0.40
codegen_flags: <defaults>
</compile_context>

<pallas_src>
import jax
import jax.numpy as jnp
from jax.experimental import pallas as pl
from jax.experimental.pallas import tpu as pltpu


def _global_max_pool_kernel(ptr_ref, gmin_ref, gmax_ref, x_ref, o_ref):
    """Segment-max of one (node-tile, feature-block) slab into the accumulator.

    ptr_ref  : (B+1,)      int32 SMEM -- per-graph node offsets (ptr[B] = N)
    gmin_ref : (num_tiles,) int32 SMEM -- first graph id present in node tile i
    gmax_ref : (num_tiles,) int32 SMEM -- last  graph id present in node tile i
    x_ref    : (TN, TF)  VMEM -- node-feature slab
    o_ref    : (B,  TF)  VMEM -- running per-graph channel-wise max (resident
                                 across the node-tile reduction axis)
    """
    if jnp.issubdtype(o_ref.dtype, jnp.floating):
        neg = jnp.array(-jnp.inf, dtype=o_ref.dtype)
    else:
        neg = jnp.array(jnp.iinfo(o_ref.dtype).min, dtype=o_ref.dtype)

    i = pl.program_id(1)          # node-tile index (reduction axis, last in grid)
    tile_n = x_ref.shape[0]

    # Initialize the accumulator on the first node tile of this feature block.
    @pl.when(i == 0)
    def _init():
        o_ref[...] = jnp.full(o_ref.shape, neg, dtype=o_ref.dtype)

    x = x_ref[...]                                                    # (TN, TF)
    row_ids = jax.lax.broadcasted_iota(jnp.int32, (tile_n, 1), 0) + i * tile_n
    out_rows = jax.lax.broadcasted_iota(jnp.int32, (o_ref.shape[0], 1), 0)

    def update_one_graph(g, carry):
        lo = ptr_ref[g]
        hi = ptr_ref[g + 1]
        node_mask = jnp.logical_and(row_ids >= lo, row_ids < hi)      # (TN, 1)
        tmax = jnp.max(jnp.where(node_mask, x, neg), axis=0, keepdims=True)  # (1, TF)
        # Fold into the single matching accumulator row (max with `neg` is a
        # no-op for the other rows).
        o_ref[...] = jnp.maximum(o_ref[...], jnp.where(out_rows == g, tmax, neg))
        return carry

    # Sorted batch => only graphs in [gmin, gmax] have nodes in this tile
    # (typically 1-2 graphs), so this dynamic loop is short regardless of B.
    jax.lax.fori_loop(gmin_ref[i], gmax_ref[i] + 1, update_one_graph, 0)


def _round_up(a, b):
    return (a + b - 1) // b * b


def global_max_pool(x, batch, batch_size, *, tile_n=512, tile_f=512):
    """r[b, f] = max_{n : batch[n] == b} x[n, f]   (batch must be sorted).

    x:          (N, F) float array of node features.
    batch:      (N,)   int array assigning each node to a graph in [0, B), sorted.
    batch_size: B (static Python int).
    Returns:    (B, F) array; graphs with no nodes are left at -inf
                (same identity as jax.ops.segment_max).
    """
    N, F = x.shape
    B = int(batch_size)
    batch = batch.astype(jnp.int32)

    # Node tile: multiple of 16 (covers bf16 sublane packing), no bigger than
    # the (rounded-up) problem so tiny inputs don't get huge padding.
    tile_n = max(16, min(int(tile_n), _round_up(N, 16)))
    tile_n = _round_up(tile_n, 16)
    # Feature block: lane-dense multiple of 128.
    f_pad = _round_up(F, 128)
    tile_f = max(128, min(int(tile_f), f_pad))
    tile_f = _round_up(tile_f, 128)
    f_pad = _round_up(f_pad, tile_f)
    n_pad = _round_up(N, tile_n)

    x_p = jnp.pad(x, ((0, n_pad - N), (0, f_pad - F)))

    # Per-graph node offsets (CSR-style pointer array); ptr[B] == N.
    ptr = jnp.searchsorted(batch, jnp.arange(B + 1, dtype=jnp.int32)).astype(jnp.int32)

    # Per-node-tile graph-id range (cheap because batch is sorted).
    num_tiles = n_pad // tile_n
    starts = jnp.arange(num_tiles, dtype=jnp.int32) * tile_n
    gmin = batch[jnp.minimum(starts, N - 1)]
    gmax = batch[jnp.minimum(starts + tile_n - 1, N - 1)]

    grid = (f_pad // tile_f, num_tiles)

    out = pl.pallas_call(
        _global_max_pool_kernel,
        out_shape=jax.ShapeDtypeStruct((B, f_pad), x.dtype),
        grid_spec=pltpu.PrefetchScalarGridSpec(
            num_scalar_prefetch=3,              # ptr, gmin, gmax -> SMEM
            grid=grid,
            in_specs=[
                pl.BlockSpec((tile_n, tile_f), lambda j, i, *_: (i, j)),  # x slab
            ],
            # Same output block for every node tile -> resident accumulator.
            out_specs=pl.BlockSpec((B, tile_f), lambda j, i, *_: (0, j)),
        ),
        compiler_params=pltpu.CompilerParams(
            # feature blocks independent (shardable across TCs on v7x);
            # node tiles are the reduction axis and must stay "arbitrary".
            dimension_semantics=("parallel", "arbitrary"),
        ),
    )(ptr, gmin, gmax, x_p)

    return out[:, :F]


if __name__ == "__main__":
    key = jax.random.PRNGKey(0)

    # Small synthetic problem: 3 graphs with 20/31/19 nodes, 200 features.
    sizes = (20, 31, 19)
    N, F, B = sum(sizes), 200, len(sizes)
    x = jax.random.normal(key, (N, F), dtype=jnp.float32)
    batch = jnp.concatenate(
        [jnp.full((s,), g, dtype=jnp.int32) for g, s in enumerate(sizes)]
    )

    ref = jax.ops.segment_max(x, batch, num_segments=B)

    # Default config: single node tile, single lane-dense feature block.
    out = jax.block_until_ready(global_max_pool(x, batch, B))
    assert out.shape == (B, F)
    assert jnp.allclose(out, ref), "mismatch vs. segment_max reference (default tiles)"

    # Force multiple node tiles (cross-tile accumulation, tiles spanning graph
    # boundaries, padded tail rows) and multiple feature blocks (parallel axis).
    out2 = jax.block_until_ready(global_max_pool(x, batch, B, tile_n=32, tile_f=128))
    assert jnp.allclose(out2, ref), "mismatch vs. segment_max reference (small tiles)"

    print("KERNEL_OK")
</pallas_src>

<mosaic_0001>
module attributes {stable_mosaic.version = 11 : i64} {
  func.func @_global_max_pool_kernel(%arg0: i32, %arg1: i32, %arg2: memref<4xi32, #tpu.memory_space<smem>>, %arg3: memref<1xi32, #tpu.memory_space<smem>>, %arg4: memref<1xi32, #tpu.memory_space<smem>>, %arg5: memref<80x256xf32, #tpu.memory_space<vmem>>, %arg6: memref<3x256xf32, #tpu.memory_space<vmem>>) attributes {dimension_semantics = [#tpu.dimension_semantics<parallel>, #tpu.dimension_semantics<arbitrary>], iteration_bounds = array<i64: 1, 1>, scalar_prefetch = 3 : i64, scratch_operands = 0 : i64, tpu.core_type = #tpu.core_type<tc>, window_params = [{transform_indices = @transform_0, window_bounds = array<i64: 80, 256>}, {transform_indices = @transform_1, window_bounds = array<i64: 3, 256>}]} {
    %c0_i32 = arith.constant 0 : i32
    %0 = arith.cmpi eq, %arg1, %c0_i32 : i32
    %1 = arith.extui %0 : i1 to i32
    %cst = arith.constant 0xFF800000 : f32
    %c0_i32_0 = arith.constant 0 : i32
    %2 = arith.cmpi ne, %1, %c0_i32_0 : i32
    scf.if %2 {
      %16 = vector.broadcast %cst : f32 to vector<3x256xf32>
      %c0_5 = arith.constant 0 : index
      %c0_6 = arith.constant 0 : index
      %17 = vector.load %arg6[%c0_5, %c0_6] : memref<3x256xf32, #tpu.memory_space<vmem>>, vector<3x256xf32>
      tpu.vector_store %arg6[%c0_5, %c0_6], %16 {strides = array<i32>} : memref<3x256xf32, #tpu.memory_space<vmem>>, vector<3x256xf32>,
    } else {
    }
    %c0 = arith.constant 0 : index
    %c0_1 = arith.constant 0 : index
    %3 = vector.load %arg5[%c0, %c0_1] : memref<80x256xf32, #tpu.memory_space<vmem>>, vector<80x256xf32>
    %4 = tpu.iota {dimensions = array<i32: 0>} : vector<80x1xi32>
    %c80_i32 = arith.constant 80 : i32
    %5 = arith.muli %arg1, %c80_i32 : i32
    %6 = vector.broadcast %5 : i32 to vector<80x1xi32>
    %7 = arith.addi %4, %6 : vector<80x1xi32>
    %8 = tpu.iota {dimensions = array<i32: 0>} : vector<3x1xi32>
    %9 = arith.index_cast %arg1 : i32 to index
    %10 = memref.load %arg3[%9] : memref<1xi32, #tpu.memory_space<smem>>
    %11 = arith.index_cast %arg1 : i32 to index
    %12 = memref.load %arg4[%11] : memref<1xi32, #tpu.memory_space<smem>>
    %c1_i32 = arith.constant 1 : i32
    %13 = arith.addi %12, %c1_i32 : i32
    %c0_i32_2 = arith.constant 0 : i32
    %cst_3 = arith.constant 0xFF800000 : f32
    %14 = arith.subi %13, %10 : i32
    %15 = arith.addi %10, %14 : i32
    %c1_i32_4 = arith.constant 1 : i32
    scf.for %arg7 = %10 to %15 step %c1_i32_4  : i32 {
      %16 = arith.index_cast %arg7 : i32 to index
      %17 = memref.load %arg2[%16] : memref<4xi32, #tpu.memory_space<smem>>
      %c1_i32_5 = arith.constant 1 : i32
      %18 = arith.addi %arg7, %c1_i32_5 : i32
      %19 = arith.index_cast %18 : i32 to index
      %20 = memref.load %arg2[%19] : memref<4xi32, #tpu.memory_space<smem>>
      %21 = vector.broadcast %17 : i32 to vector<80x1xi32>
      %22 = arith.cmpi sge, %7, %21 : vector<80x1xi32>
      %23 = vector.broadcast %20 : i32 to vector<80x1xi32>
      %24 = arith.cmpi slt, %7, %23 : vector<80x1xi32>
      %25 = arith.andi %22, %24 : vector<80x1xi1>
      %26 = vector.shape_cast %25 : vector<80x1xi1> to vector<80x1xi1>
      %27 = vector.broadcast %26 : vector<80x1xi1> to vector<80x256xi1>
      %28 = vector.broadcast %cst_3 : f32 to vector<80x256xf32>
      %29 = arith.select %27, %3, %28 : vector<80x256xi1>, vector<80x256xf32>
      %cst_6 = arith.constant dense<0xFF800000> : vector<256xf32>
      %30 = vector.multi_reduction <maximumf>, %29, %cst_6 [0] : vector<80x256xf32> to vector<256xf32>
      %31 = vector.shape_cast %30 : vector<256xf32> to vector<1x256xf32>
      %c0_7 = arith.constant 0 : index
      %c0_8 = arith.constant 0 : index
      %32 = vector.load %arg6[%c0_7, %c0_8] : memref<3x256xf32, #tpu.memory_space<vmem>>, vector<3x256xf32>
      %33 = vector.broadcast %arg7 : i32 to vector<3x1xi32>
      %34 = arith.cmpi eq, %8, %33 : vector<3x1xi32>
      %35 = vector.shape_cast %34 : vector<3x1xi1> to vector<3x1xi1>
      %36 = vector.broadcast %35 : vector<3x1xi1> to vector<3x256xi1>
      %37 = vector.shape_cast %31 : vector<1x256xf32> to vector<1x256xf32>
      %38 = vector.broadcast %37 : vector<1x256xf32> to vector<3x256xf32>
      %39 = vector.broadcast %cst_3 : f32 to vector<3x256xf32>
      %40 = arith.select %36, %38, %39 : vector<3x256xi1>, vector<3x256xf32>
      %41 = arith.maximumf %32, %40 : vector<3x256xf32>
      %c0_9 = arith.constant 0 : index
      %c0_10 = arith.constant 0 : index
      %42 = vector.load %arg6[%c0_9, %c0_10] : memref<3x256xf32, #tpu.memory_space<vmem>>, vector<3x256xf32>
      tpu.vector_store %arg6[%c0_9, %c0_10], %41 {strides = array<i32>} : memref<3x256xf32, #tpu.memory_space<vmem>>, vector<3x256xf32>,
    }
    return
  }
  func.func @transform_0(%arg0: i32, %arg1: i32, %arg2: memref<4xi32, #tpu.memory_space<smem>>, %arg3: memref<1xi32, #tpu.memory_space<smem>>, %arg4: memref<1xi32, #tpu.memory_space<smem>>) -> (i32, i32) {
    %c0_i32 = arith.constant 0 : i32
    return %arg1, %arg0 : i32, i32
  }
  func.func @transform_1(%arg0: i32, %arg1: i32, %arg2: memref<4xi32, #tpu.memory_space<smem>>, %arg3: memref<1xi32, #tpu.memory_space<smem>>, %arg4: memref<1xi32, #tpu.memory_space<smem>>) -> (i32, i32) {
    %c0_i32 = arith.constant 0 : i32
    %c0_i32_0 = arith.constant 0 : i32
    return %c0_i32, %arg0 : i32, i32
  }
}

</mosaic_0001>

<llo_original>
// kernel: tpu_custom_call.1
$region0: #{tpu_custom_call.1}
  #allocation0 [shape = 'u32[]', space=smem, size = 0x4, offset = 0x4, fixed_abs, tag = 'smem constant byte address 0x4 - core index']
  #allocation1 [shape = 'u32[144,128]{1,0:T(1,128)}', space=vmem, size = 0x12000, scoped, tag = 'internal scratch']
  #allocation2 [shape = 's32[1]{0}', space=sflag, size = 0x4, scoped, tag = 'scoped memory for tpu_custom_call.1']
  #allocation3 [shape = 'u8[512]{0}', space=smem, size = 0x200, scoped, tag = 'prefetched SMEM operand 0']
  #allocation4 [shape = 's32[1]{0:T(128)S(6)}', space=smem, size = 0x200, scoped, tag = 'prefetched SMEM operand 1']
  #allocation5 [shape = 's32[1]{0:T(128)S(6)}', space=smem, size = 0x200, scoped, tag = 'prefetched SMEM operand 2']
  %s0 = inlined_call_operand.vmem [shape: s32[4], index: 0, kind: input, shape index: {}]
  %s1 = inlined_call_operand.<no memory space> [shape: s32[1], index: 1, kind: input, shape index: {}]
  %s2 = inlined_call_operand.<no memory space> [shape: s32[1], index: 2, kind: input, shape index: {}]
  %s3 = inlined_call_operand.hbm [shape: f32[80,256], index: 3, kind: input, shape index: {}]
  %s4 = inlined_call_operand.hbm [shape: f32[3,256], index: 4, kind: output, shape index: {}]
  %s5 = sld [smem:[#allocation0]]
  $region29: #{tpu_custom_call.1} parent=0
    _
  %s7 = ssub.s32 1, %s5
  %s8 = scalar_select 0, %s7, %s5
  %s9 = sshll.u32 %s0, 4
  %s10 = int_to_ptr.vmem [resolvable:$true] %s9
  %12 = dma.vmem_to_smem %s10, 16, [#allocation3], [#allocation2]
  %13 = sst [smem:[#allocation4]] %s1
  %14 = sst [smem:[#allocation5]] %s2
  %15 = dma.done [#allocation2], 16
  %16 = sfence
  $region1: #{tpu_custom_call.1} parent=0
    #allocation6 [shape = 'u8[81920]{0}', space=vmem, size = 0x14000, scoped, tag = 'input window, operand 3, single buffered']
    #allocation7 [shape = 's32[1]{0}', space=sflag, size = 0x4, scoped, tag = 'scoped memory for tpu_custom_call.1']
    #allocation8 [shape = 's32[1]{0}', space=sflag, size = 0x4, scoped, tag = 'scoped memory for tpu_custom_call.1']
    #allocation9 [shape = 'u8[4096]{0}', space=vmem, size = 0x1000, scoped, tag = 'output window, operand 0, single buffered']
    %17 = vsyncpa [#allocation7], 0
    %18 = vsyncpa [#allocation8], 0
    // Predicated region
    $region2: #{tpu_custom_call.1} parent=1 // pred_check
      _
    $region3: #{tpu_custom_call.1} parent=1 // pred_check_branch
      %20 = sbr.rel (0) target = $region5
    $region4: #{tpu_custom_call.1} parent=1 // pred_region
      %s22 = ssub.s32 2560, 2560
      %23 = vsyncadd [#allocation7], %s22
      %s24 = sshll.u32 [#allocation6], 4
      %s25 = int_to_ptr.vmem [resolvable:$true] %s24
      %30 = dma.hbm_to_vmem [thread:$0]  %s3, 2560, %s25, [#allocation7], 256, 256, 16
    $region5: #{tpu_custom_call.1} parent=1 // pred_fallthru
      _
    // Predicated region
    $region6: #{tpu_custom_call.1} parent=1 // pred_check
      _
    $region7: #{tpu_custom_call.1} parent=1 // pred_check_branch
      %32 = sbr.rel (0) target = $region9
    $region8: #{tpu_custom_call.1} parent=1 // pred_region
      %33 = dma.done [#allocation7], 2560
    $region9: #{tpu_custom_call.1} parent=1 // pred_fallthru
      _
    %p34 = scmp.eq.s32.totalorder 0, 0
    // Predicated region
    $region10: #{tpu_custom_call.1} parent=1 // pred_check
      %p35 = pneg %p34
    $region11: #{tpu_custom_call.1} parent=1 // pred_check_branch
      %37 = sbr.rel (%p35) target = $region13
    $region12: #{tpu_custom_call.1} parent=1 // pred_region
      %38 = vst [vmem:[#allocation9] sm:$0x77] -inf
    $region13: #{tpu_custom_call.1} parent=1 // pred_fallthru
      _
    %v39 = vld [vmem:[#allocation6] sm:$0xff]
    %v40 = vld [vmem:[#allocation6 + $0x8] sm:$0xff]
    %v41 = vld [vmem:[#allocation6 + $0x10] sm:$0xff]
    %v42 = vld [vmem:[#allocation6 + $0x18] sm:$0xff]
    %v43 = vld [vmem:[#allocation6 + $0x20] sm:$0xff]
    %v44 = vld [vmem:[#allocation6 + $0x28] sm:$0xff]
    %v45 = vld [vmem:[#allocation6 + $0x30] sm:$0xff]
    %v46 = vld [vmem:[#allocation6 + $0x38] sm:$0xff]
    %v47 = vld [vmem:[#allocation6 + $0x40] sm:$0xff]
    %v48 = vld [vmem:[#allocation6 + $0x48] sm:$0xff]
    %v49 = vld [vmem:[#allocation6 + $0x50] sm:$0xff]
    %v50 = vld [vmem:[#allocation6 + $0x58] sm:$0xff]
    %v51 = vld [vmem:[#allocation6 + $0x60] sm:$0xff]
    %v52 = vld [vmem:[#allocation6 + $0x68] sm:$0xff]
    %v53 = vld [vmem:[#allocation6 + $0x70] sm:$0xff]
    %v54 = vld [vmem:[#allocation6 + $0x78] sm:$0xff]
    %v55 = vld [vmem:[#allocation6 + $0x80] sm:$0xff]
    %v56 = vld [vmem:[#allocation6 + $0x88] sm:$0xff]
    %v57 = vld [vmem:[#allocation6 + $0x90] sm:$0xff]
    %v58 = vld [vmem:[#allocation6 + $0x98] sm:$0xff]
    %v59 = vlaneseq
    %v60 = vshrl.u32 %v59, 7
    %v61 = vadd.s32 %v60, 8
    %v62 = vadd.s32 %v60, 16
    %v63 = vadd.s32 %v60, 24
    %v64 = vadd.s32 %v60, 32
    %v65 = vadd.s32 %v60, 40
    %v66 = vadd.s32 %v60, 48
    %v67 = vadd.s32 %v60, 56
    %v68 = vadd.s32 %v60, 64
    %v69 = vadd.s32 %v60, 72
    %s70 = smul.u32 0, 80
    %v71 = vstv %s70
    %v72 = vadd.s32 %v60, %v71
    %v73 = vadd.s32 %v61, %v71
    %v74 = vadd.s32 %v62, %v71
    %v75 = vadd.s32 %v63, %v71
    %v76 = vadd.s32 %v64, %v71
    %v77 = vadd.s32 %v65, %v71
    %v78 = vadd.s32 %v66, %v71
    %v79 = vadd.s32 %v67, %v71
    %v80 = vadd.s32 %v68, %v71
    %v81 = vadd.s32 %v69, %v71
    %s82 = sld [smem:[#allocation4]]
    %s83 = sld [smem:[#allocation5]]
    %s84 = sadd.s32 %s83, 1
    // While loop
    $region14: #{tpu_custom_call.1} parent=1 // loop_pre_header
      _
    $region15: #{tpu_custom_call.1} parent=1 // loop_header
      %s86 = sphi %s82, %s88
      %p87 = scmp.ge.s32.totalorder %s86, %s84
    $region16: #{tpu_custom_call.1} parent=1 // loop_header_branch
      %90 = sbr.rel (%p87) target = $region20
    $region17: #{tpu_custom_call.1} parent=1 // loop_body
      %s91 = sld [smem:[#allocation3 + %s86]]
      %s92 = sadd.s32 %s86, 1
      %s93 = sld [smem:[#allocation3 + %s92]]
      %v94 = vstv %s91
      %vm95 = vcmp.ge.s32.totalorder %v72, %v94
      %vm96 = vcmp.ge.s32.totalorder %v73, %v94
      %vm97 = vcmp.ge.s32.totalorder %v74, %v94
      %vm98 = vcmp.ge.s32.totalorder %v75, %v94
      %vm99 = vcmp.ge.s32.totalorder %v76, %v94
      %vm100 = vcmp.ge.s32.totalorder %v77, %v94
      %vm101 = vcmp.ge.s32.totalorder %v78, %v94
      %vm102 = vcmp.ge.s32.totalorder %v79, %v94
      %vm103 = vcmp.ge.s32.totalorder %v80, %v94
      %vm104 = vcmp.ge.s32.totalorder %v81, %v94
      %v105 = vstv %s93
      %vm106 = vcmp.lt.s32.totalorder %v72, %v105
      %vm107 = vcmp.lt.s32.totalorder %v73, %v105
      %vm108 = vcmp.lt.s32.totalorder %v74, %v105
      %vm109 = vcmp.lt.s32.totalorder %v75, %v105
      %vm110 = vcmp.lt.s32.totalorder %v76, %v105
      %vm111 = vcmp.lt.s32.totalorder %v77, %v105
      %vm112 = vcmp.lt.s32.totalorder %v78, %v105
      %vm113 = vcmp.lt.s32.totalorder %v79, %v105
      %vm114 = vcmp.lt.s32.totalorder %v80, %v105
      %vm115 = vcmp.lt.s32.totalorder %v81, %v105
      %vm116 = vmand %vm95, %vm106
      %vm117 = vmand %vm96, %vm107
      %vm118 = vmand %vm97, %vm108
      %vm119 = vmand %vm98, %vm109
      %vm120 = vmand %vm99, %vm110
      %vm121 = vmand %vm100, %vm111
      %vm122 = vmand %vm101, %vm112
      %vm123 = vmand %vm102, %vm113
      %vm124 = vmand %vm103, %vm114
      %vm125 = vmand %vm104, %vm115
      %v126 = vsel %vm116, 1, 0
      %v127 = vsel %vm117, 1, 0
      %v128 = vsel %vm118, 1, 0
      %v129 = vsel %vm119, 1, 0
      %v130 = vsel %vm120, 1, 0
      %v131 = vsel %vm121, 1, 0
      %v132 = vsel %vm122, 1, 0
      %v133 = vsel %vm123, 1, 0
      %v134 = vsel %vm124, 1, 0
      %v135 = vsel %vm125, 1, 0
      %vm136 = vcmp.eq.s32.totalorder %v126, 1
      %vm137 = vcmp.eq.s32.totalorder %v127, 1
      %vm138 = vcmp.eq.s32.totalorder %v128, 1
      %vm139 = vcmp.eq.s32.totalorder %v129, 1
      %vm140 = vcmp.eq.s32.totalorder %v130, 1
      %vm141 = vcmp.eq.s32.totalorder %v131, 1
      %vm142 = vcmp.eq.s32.totalorder %v132, 1
      %vm143 = vcmp.eq.s32.totalorder %v133, 1
      %vm144 = vcmp.eq.s32.totalorder %v134, 1
      %vm145 = vcmp.eq.s32.totalorder %v135, 1
      %v146 = vsel %vm136, %v39, -inf
      %v147 = vsel %vm136, %v40, -inf
      %v148 = vsel %vm137, %v41, -inf
      %v149 = vsel %vm137, %v42, -inf
      %v150 = vsel %vm138, %v43, -inf
      %v151 = vsel %vm138, %v44, -inf
      %v152 = vsel %vm139, %v45, -inf
      %v153 = vsel %vm139, %v46, -inf
      %v154 = vsel %vm140, %v47, -inf
      %v155 = vsel %vm140, %v48, -inf
      %v156 = vsel %vm141, %v49, -inf
      %v157 = vsel %vm141, %v50, -inf
      %v158 = vsel %vm142, %v51, -inf
      %v159 = vsel %vm142, %v52, -inf
      %v160 = vsel %vm143, %v53, -inf
      %v161 = vsel %vm143, %v54, -inf
      %v162 = vsel %vm144, %v55, -inf
      %v163 = vsel %vm144, %v56, -inf
      %v164 = vsel %vm145, %v57, -inf
      %v165 = vsel %vm145, %v58, -inf
      %v166 = vmax.f32 %v146, %v150
      %v167 = vmax.f32 %v148, %v152
      %v168 = vmax.f32 %v166, %v154
      %v169 = vmax.f32 %v167, %v156
      %v170 = vmax.f32 %v168, %v158
      %v171 = vmax.f32 %v169, %v160
      %v172 = vmax.f32 %v170, %v162
      %v173 = vmax.f32 %v171, %v164
      %v174 = vmax.f32 %v172, %v173
      %v175 = vrot.slane %v174, 4
      %v176 = vmax.f32 %v174, %v175
      %v177 = vrot.slane %v176, 2
      %v178 = vmax.f32 %v176, %v177
      %v179 = vrot.slane %v178, 1
      %v180 = vmax.f32 %v178, %v179
      %v181 = vmax.f32 %v147, %v151
      %v182 = vmax.f32 %v149, %v153
      %v183 = vmax.f32 %v181, %v155
      %v184 = vmax.f32 %v182, %v157
      %v185 = vmax.f32 %v183, %v159
      %v186 = vmax.f32 %v184, %v161
      %v187 = vmax.f32 %v185, %v163
      %v188 = vmax.f32 %v186, %v165
      %v189 = vmax.f32 %v187, %v188
      %v190 = vrot.slane %v189, 4
      %v191 = vmax.f32 %v189, %v190
      %v192 = vrot.slane %v191, 2
      %v193 = vmax.f32 %v191, %v192
      %v194 = vrot.slane %v193, 1
      %v195 = vmax.f32 %v193, %v194
      %v196 = vld [vmem:[#allocation9] sm:$0x77]
      %v197 = vstv %s86
      %vm198 = vcmp.eq.s32.totalorder %v60, %v197
      %v199 = vsel %vm198, 1, 0
      %vm200 = vcmp.eq.s32.totalorder %v199, 1
      %v201 = vsel %vm200, %v180, -inf
      %v202 = vsel %vm200, %v195, -inf
      %v205 = vcombine.low %v201, %v202
      %v207 = vmax.f32 %v196, %v205
      %208 = vst [vmem:[#allocation9] sm:$0x77] %v207
    $region18: #{tpu_custom_call.1} parent=1 // loop_footer
      %s88 = sadd.s32 %s86, 1
    $region19: #{tpu_custom_call.1} parent=1 // loop_footer_branch
      %85 = sbr.rel target = $region15
    $region20: #{tpu_custom_call.1} parent=1 // loop_exit
      _
    // Predicated region
    $region21: #{tpu_custom_call.1} parent=1 // pred_check
      _
    $region22: #{tpu_custom_call.1} parent=1 // pred_check_branch
      %210 = sbr.rel (0) target = $region24
    $region23: #{tpu_custom_call.1} parent=1 // pred_region
      %s212 = ssub.s32 128, 128
      %213 = vsyncadd [#allocation8], %s212
      %s215 = sshll.u32 [#allocation9], 4
      %s216 = int_to_ptr.vmem [resolvable:$true] %s215
      %218 = dma.vmem_to_hbm [thread:$0]  %s216, 128, %s4, [#allocation8]
    $region24: #{tpu_custom_call.1} parent=1 // pred_fallthru
      _
    // Predicated region
    $region25: #{tpu_custom_call.1} parent=1 // pred_check
      _
    $region26: #{tpu_custom_call.1} parent=1 // pred_check_branch
      %220 = sbr.rel (0) target = $region28
    $region27: #{tpu_custom_call.1} parent=1 // pred_region
      %221 = dma.done [#allocation8], 128
    $region28: #{tpu_custom_call.1} parent=1 // pred_fallthru
      _
    %222 = vsyncpa [#allocation7], 1
    %223 = vsyncpa [#allocation8], 1

</llo_original>
